<compile_context>
chip_gen: v5e
topology: v5e:2x2
jax: 0.10.0
libtpu: 0.0.40
codegen_flags: <defaults>
</compile_context>

<pallas_src>
import functools

import jax
import jax.numpy as jnp
from jax.experimental import pallas as pl
from jax.experimental.pallas import tpu as pltpu

VAE_BETA_KL = 1.0  # PyTorch default constant (synthetic choice)

# Pack [mu | log_var | target] into one slab only while the wrapper-side concat
# pass (read+write of N*(2D+1)) stays tiny next to the N*C logits traffic.
_PACK_STATS_MAX_COLS = 256


def _round_up(x: int, m: int) -> int:
    return (x + m - 1) // m * m


def _cdiv(a: int, b: int) -> int:
    return (a + b - 1) // b


def _tpu_vmem_and_cores():
    """(per-core VMEM bytes, TensorCores per Pallas device), safe fallbacks."""
    vmem_bytes = 64 << 20                 # conservative default (v7x per-core)
    try:
        info = pltpu.get_tpu_info()
        vmem_bytes = int(getattr(info, "vmem_capacity_bytes", vmem_bytes))
    except Exception:
        pass
    cores = 1
    try:
        dev = jax.devices()[0]
        cores = int(getattr(dev, "num_cores", 0) or 0)
        if cores <= 0:
            kind = str(getattr(dev, "device_kind", "")).lower()
            # v4 / v5p / v7x expose two TensorCores per Pallas device.
            cores = 2 if ("v4" in kind or "v5p" in kind or "v7" in kind) else 1
    except Exception:
        cores = 1
    return vmem_bytes, max(1, min(cores, 2))


def _kl_div_kernel(*refs, n_valid: int, latent_dim: int, packed: bool,
                   mask_rows: bool):
    if packed:
        xhat_ref, stats_ref, beta_ref, out_ref, acc_ref = refs
    else:
        xhat_ref, mu_ref, lv_ref, tgt_ref, beta_ref, out_ref, acc_ref = refs

    core = pl.program_id(0)       # batch split across TensorCores ("parallel")
    step = pl.program_id(1)       # reduction over this core's batch tiles
    n_steps = pl.num_programs(1)

    @pl.when(step == 0)
    def _init():
        acc_ref[...] = jnp.zeros_like(acc_ref)

    logits = xhat_ref[...].astype(jnp.float32)                       # (Tn, C)
    tile_n, n_classes = logits.shape

    if packed:
        stats = stats_ref[...]                                       # (Tn, 2D+1) f32
        mu = stats[:, :latent_dim]
        lv = stats[:, latent_dim:2 * latent_dim]
        tgt = pltpu.bitcast(stats[:, 2 * latent_dim:], jnp.int32)    # (Tn, 1)
    else:
        mu = mu_ref[...].astype(jnp.float32)
        lv = lv_ref[...].astype(jnp.float32)
        tgt = tgt_ref[...]                                           # (Tn, 1) i32

    # --- cross entropy (stable logsumexp); intermediates stay (Tn, 1) ---
    m = jnp.max(logits, axis=-1, keepdims=True)                      # (Tn, 1)
    lse = m + jnp.log(jnp.sum(jnp.exp(logits - m), axis=-1, keepdims=True))

    # target gather via where-select (no one-hot multiply / bool->f32 cast)
    col = jax.lax.broadcasted_iota(jnp.int32, (tile_n, n_classes), 1)
    tgt_logit = jnp.sum(jnp.where(col == tgt, logits, 0.0),
                        axis=-1, keepdims=True)                      # (Tn, 1)

    # --- KL term ---
    kld_row = jnp.sum(1.0 + lv - mu * mu - jnp.exp(lv),
                      axis=-1, keepdims=True)                        # (Tn, 1)

    # --- fused per-row loss; 1/N and 0.5/(N*D) fold at trace time ---
    beta = beta_ref[0, 0]
    row_loss = (jnp.float32(1.0 / n_valid) * (lse - tgt_logit)
                - (jnp.float32(0.5 / (n_valid * latent_dim)) * beta) * kld_row)

    if mask_rows:  # only traced when N % (num_cores * steps * tile_n) != 0
        row0 = (core * n_steps + step) * tile_n
        row_idx = row0 + jax.lax.broadcasted_iota(jnp.int32, (tile_n, 1), 0)
        row_loss = jnp.where(row_idx < n_valid, row_loss, 0.0)

    # single cross-sublane reduce per step into this core's accumulator
    acc_ref[...] += jnp.sum(row_loss, axis=0, keepdims=True)         # (1, 1)

    @pl.when(step == n_steps - 1)
    def _finalize():
        # lane-dense per-core partial sum; wrapper sums the num_cores partials
        out_ref[...] = jnp.broadcast_to(acc_ref[...], (1, 1, 128))


def kl_div_loss(x_hat, x, mu, log_var, beta: float = VAE_BETA_KL,
                tile_n: int = 1024):
    """Pallas equivalent of KL_div.forward(((x_hat, x), (mu, log_var)))."""
    # TODO(synk): F.cross_entropy's ignore_index=-100 and out-of-range-target
    # error checks are not implemented (targets are assumed valid class ids).
    n, c = x_hat.shape
    d = mu.shape[-1]

    vmem_bytes, num_cores = _tpu_vmem_and_cores()
    budget = vmem_bytes // 4            # double-buffered input blocks live here
    vmem_ceiling = (vmem_bytes * 3) // 4

    packed = (2 * d + 1) <= _PACK_STATS_MAX_COLS

    if packed:
        # Lane-dense slab [mu | log_var | bitcast(target)] -> (N, 2D+1) f32:
        # drops the lane-sparse (tile_n, 1) target block and one DMA stream.
        tgt_col = jax.lax.bitcast_convert_type(
            x.astype(jnp.int32), jnp.float32).reshape(n, 1)
        stats = jnp.concatenate(
            [mu.astype(jnp.float32), log_var.astype(jnp.float32), tgt_col],
            axis=-1)
        row_inputs = [x_hat, stats]
        sub = 8 if x_hat.dtype.itemsize == 4 else 16
        row_bytes = (_round_up(c, 128) * x_hat.dtype.itemsize
                     + _round_up(2 * d + 1, 128) * 4)
    else:
        # Wide latent: the concat would add a full extra HBM pass, so pass
        # mu / log_var as separate lane-dense blocks; the target column stays
        # a narrow int32 block (cheapest remaining option).
        tgt = x.astype(jnp.int32).reshape(n, 1)
        row_inputs = [x_hat, mu, log_var, tgt]
        two_byte = any(a.dtype.itemsize == 2 for a in (x_hat, mu, log_var))
        sub = 16 if two_byte else 8
        row_bytes = (_round_up(c, 128) * x_hat.dtype.itemsize
                     + _round_up(d, 128) * mu.dtype.itemsize
                     + _round_up(d, 128) * log_var.dtype.itemsize
                     + 128 * 4)

    # --- tile selection: biggest batch tile whose double-buffered blocks fit ---
    if 2 * sub * row_bytes > vmem_ceiling:
        # TODO(synk): add a class-dim reduction grid axis with an online
        # logsumexp (running max / sum / target-logit) for very large C.
        raise ValueError(
            f"KL_div kernel: C={c} needs {2 * sub * row_bytes} bytes of VMEM "
            f"for even a minimal {sub}-row tile (limit {vmem_ceiling}).")
    cap = max(sub, (budget // (2 * row_bytes)) // sub * sub)
    per_core = _round_up(_cdiv(n, num_cores), sub)
    tile_n = int(min(_round_up(tile_n, sub), cap, per_core))

    steps_per_core = _cdiv(n, num_cores * tile_n)
    n_pad = num_cores * steps_per_core * tile_n
    if n_pad != n:
        pad = n_pad - n
        row_inputs = [jnp.pad(a, ((0, pad), (0, 0))) for a in row_inputs]
    grid = (num_cores, steps_per_core)

    beta_arr = jnp.full((1, 1), beta, dtype=jnp.float32)

    def row_block(ci, si):  # batch-tile index for every row-blocked input
        return (ci * steps_per_core + si, 0)

    in_specs = [pl.BlockSpec((tile_n, a.shape[-1]), row_block,
                             memory_space=pltpu.MemorySpace.VMEM)
                for a in row_inputs]
    in_specs.append(pl.BlockSpec(memory_space=pltpu.MemorySpace.SMEM))  # beta

    block_bytes = tile_n * row_bytes
    vmem_limit = int(min(vmem_ceiling, max(4 << 20, 3 * block_bytes + (2 << 20))))

    kernel = functools.partial(_kl_div_kernel, n_valid=n, latent_dim=d,
                               packed=packed, mask_rows=(n_pad != n))

    cost = pl.CostEstimate(
        flops=int(5 * n * c + 8 * n * d),
        transcendentals=int(n * c + n * d + n),
        bytes_accessed=int(n * c * x_hat.dtype.itemsize
                           + 2 * n * d * mu.dtype.itemsize + 4 * n
                           + num_cores * 128 * 4))

    out = pl.pallas_call(
        kernel,
        out_shape=jax.ShapeDtypeStruct((num_cores, 1, 128), jnp.float32),
        grid_spec=pltpu.PrefetchScalarGridSpec(
            num_scalar_prefetch=0,
            grid=grid,
            in_specs=in_specs,
            out_specs=pl.BlockSpec((1, 1, 128), lambda ci, si: (ci, 0, 0),
                                   memory_space=pltpu.MemorySpace.VMEM),
            scratch_shapes=[pltpu.VMEM((1, 1), jnp.float32)],
        ),
        compiler_params=pltpu.CompilerParams(
            dimension_semantics=("parallel", "arbitrary"),
            vmem_limit_bytes=vmem_limit,
        ),
        cost_estimate=cost,
    )(*row_inputs, beta_arr)
    return jnp.sum(out[:, 0, 0])


def kl_div_loss_ref(x_hat, x, mu, log_var, beta: float = VAE_BETA_KL):
    # pure-JAX reference (matches torch.nn.functional.cross_entropy + KLD)
    logits = x_hat.astype(jnp.float32)
    lse = jax.scipy.special.logsumexp(logits, axis=-1)
    tgt_logit = jnp.take_along_axis(logits, x.astype(jnp.int32)[:, None], axis=-1)[:, 0]
    bce = jnp.mean(lse - tgt_logit)
    kld = -0.5 * jnp.mean(1.0 + log_var - mu ** 2 - jnp.exp(log_var))
    return bce + beta * kld


if __name__ == "__main__":
    key = jax.random.PRNGKey(0)
    k = jax.random.split(key, 8)

    # Case 1: small latent -> packed [mu | log_var | target] slab path.
    N, C, D = 8, 32, 16
    x_hat = jax.random.normal(k[0], (N, C), dtype=jnp.float32)        # logits
    x = jax.random.randint(k[1], (N,), 0, C, dtype=jnp.int32)         # class ids
    mu = jax.random.normal(k[2], (N, D), dtype=jnp.float32)
    log_var = 0.1 * jax.random.normal(k[3], (N, D), dtype=jnp.float32)
    loss = jax.block_until_ready(kl_div_loss(x_hat, x, mu, log_var))
    ref = jax.block_until_ready(kl_div_loss_ref(x_hat, x, mu, log_var))
    assert jnp.allclose(loss, ref, rtol=1e-5, atol=1e-5), (loss, ref)

    # Case 2: wide latent (separate mu/log_var blocks) + ragged batch (mask).
    N2, C2, D2 = 13, 40, 160
    x_hat2 = jax.random.normal(k[4], (N2, C2), dtype=jnp.float32)
    x2 = jax.random.randint(k[5], (N2,), 0, C2, dtype=jnp.int32)
    mu2 = jax.random.normal(k[6], (N2, D2), dtype=jnp.float32)
    log_var2 = 0.1 * jax.random.normal(k[7], (N2, D2), dtype=jnp.float32)
    loss2 = jax.block_until_ready(kl_div_loss(x_hat2, x2, mu2, log_var2, beta=0.7))
    ref2 = jax.block_until_ready(kl_div_loss_ref(x_hat2, x2, mu2, log_var2, beta=0.7))
    assert jnp.allclose(loss2, ref2, rtol=1e-5, atol=1e-5), (loss2, ref2)

    print("KERNEL_OK")
</pallas_src>

<mosaic_0001>
module attributes {stable_mosaic.version = 11 : i64} {
  func.func @_kl_div_kernel(%arg0: i32, %arg1: i32, %arg2: memref<8x32xf32, #tpu.memory_space<vmem>>, %arg3: memref<8x33xf32, #tpu.memory_space<vmem>>, %arg4: memref<1x1xf32, #tpu.memory_space<smem>>, %arg5: memref<1x1x128xf32, #tpu.memory_space<vmem>>, %arg6: memref<1x1xf32, #tpu.memory_space<vmem>>) attributes {dimension_semantics = [#tpu.dimension_semantics<parallel>, #tpu.dimension_semantics<arbitrary>], iteration_bounds = array<i64: 1, 1>, scalar_prefetch = 0 : i64, scratch_operands = 1 : i64, tpu.core_type = #tpu.core_type<tc>, window_params = [{transform_indices = @transform_0, window_bounds = array<i64: 8, 32>}, {transform_indices = @transform_1, window_bounds = array<i64: 8, 33>}, {transform_indices = @transform_2, window_bounds = array<i64: 1, 1>}, {transform_indices = @transform_3, window_bounds = array<i64: 1, 1, 128>}]} {
    %c0_i32 = arith.constant 0 : i32
    %0 = arith.cmpi eq, %arg1, %c0_i32 : i32
    %1 = arith.extui %0 : i1 to i32
    %c0_i32_0 = arith.constant 0 : i32
    %2 = arith.cmpi ne, %1, %c0_i32_0 : i32
    scf.if %2 {
      %cst_20 = arith.constant 0.000000e+00 : f32
      %49 = vector.broadcast %cst_20 : f32 to vector<1x1xf32>
      %c0_21 = arith.constant 0 : index
      %c0_22 = arith.constant 0 : index
      %50 = vector.load %arg6[%c0_21, %c0_22] : memref<1x1xf32, #tpu.memory_space<vmem>>, vector<1x1xf32>
      tpu.vector_store %arg6[%c0_21, %c0_22], %49 {strides = array<i32>} : memref<1x1xf32, #tpu.memory_space<vmem>>, vector<1x1xf32>,
    } else {
    }
    %c0 = arith.constant 0 : index
    %c0_1 = arith.constant 0 : index
    %3 = vector.load %arg2[%c0, %c0_1] : memref<8x32xf32, #tpu.memory_space<vmem>>, vector<8x32xf32>
    %c0_2 = arith.constant 0 : index
    %c0_3 = arith.constant 0 : index
    %4 = vector.load %arg3[%c0_2, %c0_3] : memref<8x33xf32, #tpu.memory_space<vmem>>, vector<8x33xf32>
    %5 = vector.extract_strided_slice %4 {offsets = [0, 0], sizes = [8, 16], strides = [1, 1]} : vector<8x33xf32> to vector<8x16xf32>
    %6 = vector.extract_strided_slice %4 {offsets = [0, 16], sizes = [8, 16], strides = [1, 1]} : vector<8x33xf32> to vector<8x16xf32>
    %7 = vector.extract_strided_slice %4 {offsets = [0, 32], sizes = [8, 1], strides = [1, 1]} : vector<8x33xf32> to vector<8x1xf32>
    %8 = tpu.bitcast %7 : vector<8x1xf32> -> vector<8x1xi32>
    %cst = arith.constant dense<0xFF800000> : vector<8xf32>
    %9 = vector.multi_reduction <maximumf>, %3, %cst [1] : vector<8x32xf32> to vector<8xf32>
    %10 = vector.shape_cast %9 : vector<8xf32> to vector<8x1xf32>
    %11 = vector.broadcast %10 : vector<8x1xf32> to vector<8x32xf32>
    %12 = arith.subf %3, %11 : vector<8x32xf32>
    %13 = math.exp %12 : vector<8x32xf32>
    %cst_4 = arith.constant dense<0.000000e+00> : vector<8xf32>
    %14 = vector.multi_reduction <add>, %13, %cst_4 [1] : vector<8x32xf32> to vector<8xf32>
    %15 = vector.shape_cast %14 : vector<8xf32> to vector<8x1xf32>
    %16 = math.log %15 : vector<8x1xf32>
    %17 = arith.addf %10, %16 : vector<8x1xf32>
    %18 = tpu.iota {dimensions = array<i32: 1>} : vector<8x32xi32>
    %19 = vector.broadcast %8 : vector<8x1xi32> to vector<8x32xi32>
    %20 = arith.cmpi eq, %18, %19 : vector<8x32xi32>
    %cst_5 = arith.constant 0.000000e+00 : f32
    %21 = vector.broadcast %cst_5 : f32 to vector<8x32xf32>
    %22 = arith.select %20, %3, %21 : vector<8x32xi1>, vector<8x32xf32>
    %cst_6 = arith.constant dense<0.000000e+00> : vector<8xf32>
    %23 = vector.multi_reduction <add>, %22, %cst_6 [1] : vector<8x32xf32> to vector<8xf32>
    %24 = vector.shape_cast %23 : vector<8xf32> to vector<8x1xf32>
    %cst_7 = arith.constant 1.000000e+00 : f32
    %25 = vector.broadcast %cst_7 : f32 to vector<8x16xf32>
    %26 = arith.addf %25, %6 : vector<8x16xf32>
    %27 = arith.mulf %5, %5 : vector<8x16xf32>
    %28 = arith.subf %26, %27 : vector<8x16xf32>
    %29 = math.exp %6 : vector<8x16xf32>
    %30 = arith.subf %28, %29 : vector<8x16xf32>
    %cst_8 = arith.constant dense<0.000000e+00> : vector<8xf32>
    %31 = vector.multi_reduction <add>, %30, %cst_8 [1] : vector<8x16xf32> to vector<8xf32>
    %32 = vector.shape_cast %31 : vector<8xf32> to vector<8x1xf32>
    %c0_9 = arith.constant 0 : index
    %c0_10 = arith.constant 0 : index
    %33 = memref.load %arg4[%c0_9, %c0_10] : memref<1x1xf32, #tpu.memory_space<smem>>
    %34 = arith.subf %17, %24 : vector<8x1xf32>
    %cst_11 = arith.constant 1.250000e-01 : f32
    %35 = vector.broadcast %cst_11 : f32 to vector<8x1xf32>
    %36 = arith.mulf %35, %34 : vector<8x1xf32>
    %cst_12 = arith.constant 3.906250e-03 : f32
    %37 = arith.mulf %cst_12, %33 : f32
    %38 = vector.broadcast %37 : f32 to vector<8x1xf32>
    %39 = arith.mulf %38, %32 : vector<8x1xf32>
    %40 = arith.subf %36, %39 : vector<8x1xf32>
    %c0_13 = arith.constant 0 : index
    %c0_14 = arith.constant 0 : index
    %41 = vector.load %arg6[%c0_13, %c0_14] : memref<1x1xf32, #tpu.memory_space<vmem>>, vector<1x1xf32>
    %cst_15 = arith.constant dense<0.000000e+00> : vector<1xf32>
    %42 = vector.multi_reduction <add>, %40, %cst_15 [0] : vector<8x1xf32> to vector<1xf32>
    %43 = vector.shape_cast %42 : vector<1xf32> to vector<1x1xf32>
    %44 = arith.addf %41, %43 : vector<1x1xf32>
    %c0_16 = arith.constant 0 : index
    %c0_17 = arith.constant 0 : index
    %45 = vector.load %arg6[%c0_16, %c0_17] : memref<1x1xf32, #tpu.memory_space<vmem>>, vector<1x1xf32>
    tpu.vector_store %arg6[%c0_16, %c0_17], %44 {strides = array<i32>} : memref<1x1xf32, #tpu.memory_space<vmem>>, vector<1x1xf32>,
    %c0_i32_18 = arith.constant 0 : i32
    %46 = arith.cmpi eq, %arg1, %c0_i32_18 : i32
    %47 = arith.extui %46 : i1 to i32
    %c0_i32_19 = arith.constant 0 : i32
    %48 = arith.cmpi ne, %47, %c0_i32_19 : i32
    scf.if %48 {
      %c0_20 = arith.constant 0 : index
      %c0_21 = arith.constant 0 : index
      %49 = vector.load %arg6[%c0_20, %c0_21] : memref<1x1xf32, #tpu.memory_space<vmem>>, vector<1x1xf32>
      %50 = vector.shape_cast %49 : vector<1x1xf32> to vector<1x1x1xf32>
      %51 = vector.broadcast %50 : vector<1x1x1xf32> to vector<1x1x128xf32>
      %c0_22 = arith.constant 0 : index
      %c0_23 = arith.constant 0 : index
      %c0_24 = arith.constant 0 : index
      %52 = vector.load %arg5[%c0_22, %c0_23, %c0_24] : memref<1x1x128xf32, #tpu.memory_space<vmem>>, vector<1x1x128xf32>
      tpu.vector_store %arg5[%c0_22, %c0_23, %c0_24], %51 {strides = array<i32>} : memref<1x1x128xf32, #tpu.memory_space<vmem>>, vector<1x1x128xf32>,
    } else {
    }
    return
  }
  func.func @transform_0(%arg0: i32, %arg1: i32) -> (i32, i32) {
    %c1_i32 = arith.constant 1 : i32
    %0 = arith.muli %arg0, %c1_i32 : i32
    %1 = arith.addi %0, %arg1 : i32
    %c0_i32 = arith.constant 0 : i32
    %c0_i32_0 = arith.constant 0 : i32
    return %1, %c0_i32 : i32, i32
  }
  func.func @transform_1(%arg0: i32, %arg1: i32) -> (i32, i32) {
    %c1_i32 = arith.constant 1 : i32
    %0 = arith.muli %arg0, %c1_i32 : i32
    %1 = arith.addi %0, %arg1 : i32
    %c0_i32 = arith.constant 0 : i32
    %c0_i32_0 = arith.constant 0 : i32
    return %1, %c0_i32 : i32, i32
  }
  func.func @transform_2(%arg0: i32, %arg1: i32) -> (i32, i32) {
    %c0_i32 = arith.constant 0 : i32
    %c0_i32_0 = arith.constant 0 : i32
    %c0_i32_1 = arith.constant 0 : i32
    return %c0_i32, %c0_i32_0 : i32, i32
  }
  func.func @transform_3(%arg0: i32, %arg1: i32) -> (i32, i32, i32) {
    %c0_i32 = arith.constant 0 : i32
    %c0_i32_0 = arith.constant 0 : i32
    %c0_i32_1 = arith.constant 0 : i32
    return %arg0, %c0_i32, %c0_i32_0 : i32, i32, i32
  }
}

</mosaic_0001>

<llo_original>
// kernel: tpu_custom_call.1
$region0: #{tpu_custom_call.1}
  #allocation0 [shape = 'u32[]', space=smem, size = 0x4, offset = 0x4, fixed_abs, tag = 'smem constant byte address 0x4 - core index']
  #allocation1 [shape = 'u32[72,128]{1,0:T(1,128)}', space=vmem, size = 0x9000, scoped, tag = 'internal scratch']
  #allocation2 [shape = 'f32[1,1]{1,0:T(1,128)}', space=vmem, size = 0x200, scoped, tag = 'scratch operand']
  #allocation3 [shape = 'f32[1,1]{1,0:T(1,128)S(6)}', space=smem, size = 0x200, scoped, tag = 'scoped memory for tpu_custom_call.1']
  %s0 = inlined_call_operand.hbm [shape: f32[8,32], index: 0, kind: input, shape index: {}]
  %s1 = inlined_call_operand.hbm [shape: f32[8,33], index: 1, kind: input, shape index: {}]
  %s2 = inlined_call_operand.<no memory space> [shape: f32[1,1], index: 2, kind: input, shape index: {}]
  %s3 = inlined_call_operand.hbm [shape: f32[1,1,128], index: 3, kind: output, shape index: {}]
  %s4 = sld [smem:[#allocation0]]
  $region38: #{tpu_custom_call.1} parent=0
    _
  %s6 = ssub.s32 1, %s4
  %s7 = scalar_select 0, %s6, %s4
  %8 = sst [smem:[#allocation3]] %s2
  $region1: #{tpu_custom_call.1} parent=0
    #allocation4 [shape = 'u8[4096]{0}', space=vmem, size = 0x1000, scoped, tag = 'input window, operand 0, single buffered']
    #allocation5 [shape = 's32[1]{0}', space=sflag, size = 0x4, scoped, tag = 'scoped memory for tpu_custom_call.1']
    #allocation6 [shape = 's32[1]{0}', space=sflag, size = 0x4, scoped, tag = 'scoped memory for tpu_custom_call.1']
    #allocation7 [shape = 'u8[4096]{0}', space=vmem, size = 0x1000, scoped, tag = 'input window, operand 1, single buffered']
    #allocation8 [shape = 's32[1]{0}', space=sflag, size = 0x4, scoped, tag = 'scoped memory for tpu_custom_call.1']
    #allocation9 [shape = 'u8[512]{0}', space=vmem, size = 0x400, scoped, tag = 'output window, operand 0, single buffered']
    %9 = vsyncpa [#allocation5], 0
    %10 = vsyncpa [#allocation8], 0
    %11 = vsyncpa [#allocation6], 0
    // Predicated region
    $region2: #{tpu_custom_call.1} parent=1 // pred_check
      _
    $region3: #{tpu_custom_call.1} parent=1 // pred_check_branch
      %13 = sbr.rel (0) target = $region5
    $region4: #{tpu_custom_call.1} parent=1 // pred_region
      %s14 = sadd.s32 0, 0
      %16 = vsyncadd [#allocation5], 0
      %s17 = smul.addr %s14, 8
      %s18 = scalar_lea.hbm %s0, %s17
      %s20 = sshll.u32 %s18, 4
      %s21 = int_to_ptr.hbm [resolvable:$true] %s20
      %s22 = sshll.u32 [#allocation4], 4
      %s23 = int_to_ptr.vmem [resolvable:$true] %s22
      %25 = dma.hbm_to_vmem [thread:$0]  %s21, 128, %s23, [#allocation5]
    $region5: #{tpu_custom_call.1} parent=1 // pred_fallthru
      _
    // Predicated region
    $region6: #{tpu_custom_call.1} parent=1 // pred_check
      _
    $region7: #{tpu_custom_call.1} parent=1 // pred_check_branch
      %27 = sbr.rel (0) target = $region9
    $region8: #{tpu_custom_call.1} parent=1 // pred_region
      %s28 = sadd.s32 0, 0
      %30 = vsyncadd [#allocation8], 0
      %s31 = smul.addr %s28, 8
      %s32 = scalar_lea.hbm %s1, %s31
      %s34 = sshll.u32 %s32, 4
      %s35 = int_to_ptr.hbm [resolvable:$true] %s34
      %s36 = sshll.u32 [#allocation7], 4
      %s37 = int_to_ptr.vmem [resolvable:$true] %s36
      %39 = dma.hbm_to_vmem [thread:$0]  %s35, 128, %s37, [#allocation8]
    $region9: #{tpu_custom_call.1} parent=1 // pred_fallthru
      _
    // Predicated region
    $region10: #{tpu_custom_call.1} parent=1 // pred_check
      _
    $region11: #{tpu_custom_call.1} parent=1 // pred_check_branch
      %41 = sbr.rel (0) target = $region13
    $region12: #{tpu_custom_call.1} parent=1 // pred_region
      _
    $region13: #{tpu_custom_call.1} parent=1 // pred_fallthru
      _
    // Predicated region
    $region14: #{tpu_custom_call.1} parent=1 // pred_check
      _
    $region15: #{tpu_custom_call.1} parent=1 // pred_check_branch
      %43 = sbr.rel (0) target = $region17
    $region16: #{tpu_custom_call.1} parent=1 // pred_region
      %45 = dma.done [#allocation5], 128
    $region17: #{tpu_custom_call.1} parent=1 // pred_fallthru
      _
    // Predicated region
    $region18: #{tpu_custom_call.1} parent=1 // pred_check
      _
    $region19: #{tpu_custom_call.1} parent=1 // pred_check_branch
      %47 = sbr.rel (0) target = $region21
    $region20: #{tpu_custom_call.1} parent=1 // pred_region
      %49 = dma.done [#allocation8], 128
    $region21: #{tpu_custom_call.1} parent=1 // pred_fallthru
      _
    %s50 = sadd.s32 0, 0
    %s51 = sadd.s32 0, 0
    %p52 = scmp.eq.s32.totalorder 0, 0
    // Predicated region
    $region22: #{tpu_custom_call.1} parent=1 // pred_check
      %p53 = pneg %p52
    $region23: #{tpu_custom_call.1} parent=1 // pred_check_branch
      %55 = sbr.rel (%p53) target = $region25
    $region24: #{tpu_custom_call.1} parent=1 // pred_region
      %vm56 = vcmask 0
      %57 = vst.msk [vmem:[#allocation2] sm:$0x1] %vm56, 0.0
    $region25: #{tpu_custom_call.1} parent=1 // pred_fallthru
      _
    %v58 = vld [vmem:[#allocation4] sm:$0xff]
    %v59 = vld [vmem:[#allocation7] sm:$0xff]
    %vm61 = vcmask 261120
    %v62 = vsel %vm61, %v58, -inf
    %63 = vmax.xlane.f32.xlu0 %v62
    %v64 = vpop.xlane.xlu0 %63
    %v65 = vsub.f32 %v58, %v64
    %v66 = vmul.f32 %v65, 1.442695
    %v67 = vpow.pop %v66
    %v68 = vsel %vm61, %v67, 0.0
    %69 = vadd.xlane.f32.xlu0 %v68
    %v70 = vpop.xlane.xlu0 %69
    %v71 = vlog2.pop %v70
    %v72 = vmul.f32 %v71, 0.6931472
    %v73 = vadd.f32 %v64, %v72
    %v74 = vlaneseq
    %v75 = vand.u32 %v74, 127
    %76 = vset.pattern.permute.xlu0 32
    %77 = vperm.xlu0 %76, %v59
    %v78 = vpop.permute.xlu0 %77
    %vm79 = vcmp.eq.s32.totalorder %v75, %v78
    %v80 = vsel %vm79, %v58, 0.0
    %v81 = vsel %vm61, %v80, 0.0
    %82 = vadd.xlane.f32.xlu0 %v81
    %v83 = vpop.xlane.xlu0 %82
    %v84 = vadd.f32 %v59, 1.0
    %v85 = vmul.f32 %v59, %v59
    %87 = vrot.lane.b32.xlu0 %v85, 16
    %v88 = vpop.permute.xlu0 %87
    %v90 = vsub.f32 %v84, %v88
    %v91 = vmul.f32 %v59, 1.442695
    %v92 = vpow.pop %v91
    %v93 = vsub.f32 %v90, %v92
    %95 = vrot.lane.b32.xlu0 %v93, 112
    %v96 = vpop.permute.xlu0 %95
    %vm98 = vcmask 130048
    %v99 = vsel %vm98, %v96, 0.0
    %100 = vadd.xlane.f32.xlu0 %v99
    %v101 = vpop.xlane.xlu0 %100
    %s102 = sld [smem:[#allocation3]]
    %v103 = vsub.f32 %v73, %v83
    %v104 = vmul.f32 %v103, 0.125
    %s105 = smul.f32 %s102, 0.00390625
    %v106 = vstv %s105
    %v107 = vmul.f32 %v106, %v101
    %v108 = vsub.f32 %v104, %v107
    %v109 = vld [vmem:[#allocation2] sm:$0x1]
    %v110 = vrot.slane %v108, 4
    %v111 = vadd.f32 %v108, %v110
    %v112 = vrot.slane %v111, 2
    %v113 = vadd.f32 %v111, %v112
    %v114 = vrot.slane %v113, 1
    %v115 = vadd.f32 %v113, %v114
    %v116 = vadd.f32 %v109, %v115
    %vm117 = vcmask 0
    %118 = vst.msk [vmem:[#allocation2] sm:$0x1] %vm117, %v116
    // Predicated region
    $region26: #{tpu_custom_call.1} parent=1 // pred_check
      %p119 = pneg %p52
    $region27: #{tpu_custom_call.1} parent=1 // pred_check_branch
      %121 = sbr.rel (%p119) target = $region29
    $region28: #{tpu_custom_call.1} parent=1 // pred_region
      %v122 = vld [vmem:[#allocation2] sm:$0x1]
      %124 = vset.pattern.permute.xlu0 0
      %125 = vperm.xlu0 %124, %v122
      %v126 = vpop.permute.xlu0 %125
      %v128 = vperm.slane %v126, 0
      %129 = vst [vmem:[#allocation9] sm:$0x1] %v128
    $region29: #{tpu_custom_call.1} parent=1 // pred_fallthru
      _
    // Predicated region
    $region30: #{tpu_custom_call.1} parent=1 // pred_check
      _
    $region31: #{tpu_custom_call.1} parent=1 // pred_check_branch
      %131 = sbr.rel (0) target = $region33
    $region32: #{tpu_custom_call.1} parent=1 // pred_region
      %133 = vsyncadd [#allocation6], 0
      %s135 = sshll.u32 [#allocation9], 4
      %s136 = int_to_ptr.vmem [resolvable:$true] %s135
      %s137 = sshll.u32 %s3, 4
      %s138 = int_to_ptr.hbm [resolvable:$true] %s137
      %140 = dma.vmem_to_hbm [thread:$0]  %s136, 16, %s138, [#allocation6]
    $region33: #{tpu_custom_call.1} parent=1 // pred_fallthru
      _
    // Predicated region
    $region34: #{tpu_custom_call.1} parent=1 // pred_check
      _
    $region35: #{tpu_custom_call.1} parent=1 // pred_check_branch
      %142 = sbr.rel (0) target = $region37
    $region36: #{tpu_custom_call.1} parent=1 // pred_region
      %144 = dma.done [#allocation6], 16
    $region37: #{tpu_custom_call.1} parent=1 // pred_fallthru
      _
    %145 = vsyncpa [#allocation5], 1
    %146 = vsyncpa [#allocation8], 1
    %147 = vsyncpa [#allocation6], 1

</llo_original>
